<compile_context>
chip_gen: v7x
topology: tpu7x:2x2x1
jax: 0.10.0
libtpu: 0.0.40
codegen_flags: <defaults>
</compile_context>

<pallas_src>
import jax
import jax.numpy as jnp
from jax.experimental import pallas as pl
from jax.experimental.pallas import tpu as pltpu

# TODO(synk): GaoNet's exact activation isn't shown in the prompt; assuming
# nn.LeakyReLU (default negative_slope=0.01) between the two Linear layers.
_NEG_SLOPE = 0.01


def _experts_kernel(x_ref, w1_ref, b1_ref, w2_ref, b2_ref, o_ref):
    """One expert-block x one batch-tile.

    x_ref : (Bt, D_in)        input tile, shared by all experts (compute dtype)
    w1_ref: (1, D_in, eb*H)   layer-1 weights, eb experts concatenated on lanes
    b1_ref: (1, 1, eb*H)      layer-1 bias (f32)
    w2_ref: (eb, H, D_out)    layer-2 weights, per expert, pre-transposed
    b2_ref: (eb, 1, D_out)    layer-2 bias (f32)
    o_ref : (eb, Bt, D_out)   output slab, already in torch.stack layout
    """
    eb, hid, _ = w2_ref.shape

    # Layer 1: a single lane-dense matmul for all eb experts (N = eb*H).
    h = jnp.dot(x_ref[...], w1_ref[0], preferred_element_type=jnp.float32)
    h = h + b1_ref[0]
    h = jnp.maximum(h, _NEG_SLOPE * h)          # LeakyReLU: one vmul + one vmax
    h = h.astype(w2_ref.dtype)                  # back to compute dtype for MXU

    # Layer 2: exact per-expert matmuls (no block-diagonal zero work).
    for e in range(eb):                         # static unroll, eb is small
        he = h[:, e * hid:(e + 1) * hid]
        ye = jnp.dot(he, w2_ref[e], preferred_element_type=jnp.float32)
        o_ref[e] = (ye + b2_ref[e]).astype(o_ref.dtype)


def _pick_experts_per_block(E, H, D_in, D_out, itemsize, budget_bytes=8 << 20):
    """Largest eb dividing E that keeps >= 2 grid blocks (v7x TC sharding) and
    keeps the double-buffered per-step weight block within a VMEM budget
    (conservative enough for v7x's 64 MiB physical VMEM)."""
    best = 1
    for eb in range(1, E + 1):
        if E % eb != 0:
            continue
        if E // eb < 2 and E > 1:
            continue                                    # keep >= 2 grid blocks
        if 2 * itemsize * eb * H * (D_in + D_out) > budget_bytes:
            continue                                    # double-buffered weights
        best = eb
    return best


def _pick_batch_tile(B):
    if B <= 256:
        return B
    for bt in (256, 128, 64, 32, 16, 8):
        if B % bt == 0:
            return bt
    return B


def pack_expert_params(w1, b1, w2, b2, *, experts_per_block=None,
                       compute_dtype=jnp.float32):
    """One-time repacking of the torch-layout expert params.

    Call this ONCE per weight update (not per forward): the forward pass only
    consumes the packed arrays, so no transposes live on the hot path.

    torch layout:  W1 [E, H, D_in], b1 [E, 1, H],
                   W2 [E, D_out, H], b2 [E, 1, D_out].
    Returns ((w1p, b1p, w2p, b2p), experts_per_block).
    """
    E, H, D_in = w1.shape
    D_out = w2.shape[1]
    itemsize = jnp.dtype(compute_dtype).itemsize
    eb = (_pick_experts_per_block(E, H, D_in, D_out, itemsize)
          if experts_per_block is None else experts_per_block)
    assert E % eb == 0, (E, eb)
    n_eb = E // eb

    # Layer 1: [E, H, D_in] -> [n_eb, D_in, eb*H]  (e-major, h-minor lanes).
    w1p = jnp.transpose(w1, (2, 0, 1)).reshape(D_in, n_eb, eb * H)
    w1p = jnp.transpose(w1p, (1, 0, 2)).astype(compute_dtype)
    b1p = b1.reshape(n_eb, 1, eb * H).astype(jnp.float32)
    # Layer 2: [E, D_out, H] -> [E, H, D_out]  (per-expert, pre-transposed).
    w2p = jnp.transpose(w2, (0, 2, 1)).astype(compute_dtype)
    b2p = b2.astype(jnp.float32)
    return (w1p, b1p, w2p, b2p), eb


def experts_forward(x, packed, experts_per_block, *, batch_tile=None,
                    out_dtype=None):
    """x: [B, D_in]; packed params from pack_expert_params().
    Returns [E, B, D_out] (== torch.stack over the expert list)."""
    w1p, b1p, w2p, b2p = packed
    n_eb, D_in, ebH = w1p.shape
    E, H, D_out = w2p.shape
    eb = experts_per_block
    assert eb * H == ebH and n_eb * eb == E, (eb, H, ebH, n_eb, E)

    B = x.shape[0]
    bt = _pick_batch_tile(B) if batch_tile is None else batch_tile
    assert B % bt == 0 and (bt == B or bt % 8 == 0), (B, bt)
    n_bt = B // bt
    out_dtype = x.dtype if out_dtype is None else out_dtype
    xc = x.astype(w1p.dtype)

    # Explicit VMEM budget: double-buffered per-step working set + margin,
    # capped at 64 MiB so the same setting is legal on v7x.
    itemsize = jnp.dtype(w1p.dtype).itemsize
    blk_elems = (bt * D_in + D_in * ebH + ebH + eb * H * D_out + eb * D_out
                 + eb * bt * D_out)
    vmem_limit = int(min(max(2 * itemsize * blk_elems + (4 << 20), 32 << 20),
                         64 << 20))

    grid_spec = pltpu.PrefetchScalarGridSpec(
        num_scalar_prefetch=0,
        # Expert blocks outer, batch tiles inner: weight blocks are DMA'd once
        # per expert block (their block index is constant across the inner
        # batch axis), only the small x/out tiles change on the inner axis.
        grid=(n_eb, n_bt),
        in_specs=[
            pl.BlockSpec((bt, D_in), lambda g, b: (b, 0)),           # x tile
            pl.BlockSpec((1, D_in, ebH), lambda g, b: (g, 0, 0)),    # W1 block
            pl.BlockSpec((1, 1, ebH), lambda g, b: (g, 0, 0)),       # b1 block
            pl.BlockSpec((eb, H, D_out), lambda g, b: (g, 0, 0)),    # W2 block
            pl.BlockSpec((eb, 1, D_out), lambda g, b: (g, 0, 0)),    # b2 block
        ],
        out_specs=pl.BlockSpec((eb, bt, D_out), lambda g, b: (g, b, 0)),
    )

    # Exact cost (no zero-padded layer-2 work any more).
    flops = 2 * B * E * H * (D_in + D_out)
    bytes_accessed = int(itemsize * (n_eb * x.size + w1p.size + w2p.size)
                         + 4 * (b1p.size + b2p.size)
                         + jnp.dtype(out_dtype).itemsize * E * B * D_out)
    cost = pl.CostEstimate(flops=flops, transcendentals=0,
                           bytes_accessed=bytes_accessed)

    return pl.pallas_call(
        _experts_kernel,
        out_shape=jax.ShapeDtypeStruct((E, B, D_out), out_dtype),
        grid_spec=grid_spec,
        compiler_params=pltpu.CompilerParams(
            dimension_semantics=("parallel", "parallel"),
            vmem_limit_bytes=vmem_limit),
        cost_estimate=cost,
    )(xc, w1p, b1p, w2p, b2p)


def _reference(x, w1, b1, w2, b2):
    # Pure-JAX reference of torch.stack([GaoNet_e(x) for e in experts]).
    h = jnp.einsum("bd,ehd->ebh", x, w1) + b1           # Linear 1
    h = jnp.where(h > 0, h, _NEG_SLOPE * h)             # LeakyReLU
    return jnp.einsum("ebh,eoh->ebo", h, w2) + b2       # Linear 2


if __name__ == "__main__":
    # Small shapes: E experts, batch B, reg = [D_in, H, D_out]
    E, B, D_in, H, D_out = 8, 8, 32, 64, 8

    key = jax.random.PRNGKey(0)
    kx, kw1, kb1, kw2, kb2 = jax.random.split(key, 5)

    x = jax.random.normal(kx, (B, D_in), dtype=jnp.float32)
    # Deterministic param init (mimics nn.Linear uniform(-1/sqrt(fan_in), .)).
    w1 = jax.random.uniform(kw1, (E, H, D_in), jnp.float32,
                            -1.0 / jnp.sqrt(D_in), 1.0 / jnp.sqrt(D_in))
    b1 = jax.random.uniform(kb1, (E, 1, H), jnp.float32,
                            -1.0 / jnp.sqrt(D_in), 1.0 / jnp.sqrt(D_in))
    w2 = jax.random.uniform(kw2, (E, D_out, H), jnp.float32,
                            -1.0 / jnp.sqrt(H), 1.0 / jnp.sqrt(H))
    b2 = jax.random.uniform(kb2, (E, 1, D_out), jnp.float32,
                            -1.0 / jnp.sqrt(H), 1.0 / jnp.sqrt(H))

    ref = _reference(x, w1, b1, w2, b2)

    # --- f32 compute path (exact check) -----------------------------------
    packed, eb = pack_expert_params(w1, b1, w2, b2)   # once per weight update
    out = jax.block_until_ready(experts_forward(x, packed, eb))
    assert out.shape == (E, B, D_out), out.shape
    assert jnp.allclose(out, ref, atol=1e-5, rtol=1e-5), "f32 mismatch vs ref"

    # --- bf16 compute path (half the weight bytes; f32 accumulation) ------
    packed16, eb16 = pack_expert_params(w1, b1, w2, b2,
                                        compute_dtype=jnp.bfloat16)
    out16 = jax.block_until_ready(experts_forward(x, packed16, eb16))
    assert out16.shape == (E, B, D_out) and out16.dtype == jnp.float32
    assert jnp.allclose(out16, ref, atol=5e-2, rtol=5e-2), "bf16 mismatch"

    print("KERNEL_OK")
</pallas_src>

<mosaic_0001>
module attributes {stable_mosaic.version = 11 : i64} {
  func.func @_experts_kernel(%arg0: i32, %arg1: i32, %arg2: memref<8x32xf32, #tpu.memory_space<vmem>>, %arg3: memref<1x32x256xf32, #tpu.memory_space<vmem>>, %arg4: memref<1x1x256xf32, #tpu.memory_space<vmem>>, %arg5: memref<4x64x8xf32, #tpu.memory_space<vmem>>, %arg6: memref<4x1x8xf32, #tpu.memory_space<vmem>>, %arg7: memref<4x8x8xf32, #tpu.memory_space<vmem>>) attributes {dimension_semantics = [#tpu.dimension_semantics<parallel>, #tpu.dimension_semantics<parallel>], iteration_bounds = array<i64: 2, 1>, scalar_prefetch = 0 : i64, scratch_operands = 0 : i64, tpu.core_type = #tpu.core_type<tc>, window_params = [{transform_indices = @transform_0, window_bounds = array<i64: 8, 32>}, {transform_indices = @transform_1, window_bounds = array<i64: 1, 32, 256>}, {transform_indices = @transform_2, window_bounds = array<i64: 1, 1, 256>}, {transform_indices = @transform_3, window_bounds = array<i64: 4, 64, 8>}, {transform_indices = @transform_4, window_bounds = array<i64: 4, 1, 8>}, {transform_indices = @transform_5, window_bounds = array<i64: 4, 8, 8>}]} {
    %c0 = arith.constant 0 : index
    %c0_0 = arith.constant 0 : index
    %0 = vector.load %arg2[%c0, %c0_0] : memref<8x32xf32, #tpu.memory_space<vmem>>, vector<8x32xf32>
    %c0_1 = arith.constant 0 : index
    %c0_2 = arith.constant 0 : index
    %c0_3 = arith.constant 0 : index
    %1 = vector.load %arg3[%c0_1, %c0_2, %c0_3] : memref<1x32x256xf32, #tpu.memory_space<vmem>>, vector<1x32x256xf32>
    %2 = vector.shape_cast %1 : vector<1x32x256xf32> to vector<32x256xf32>
    %cst = arith.constant dense<0.000000e+00> : vector<8x256xf32>
    %3 = tpu.matmul %0, %2, %cst {dimension_numbers = #tpu.dot_dimension_numbers<[1], [0], [0], [1], [0, 0, 1, 1], [], []>} : vector<8x32xf32>, vector<32x256xf32>, vector<8x256xf32> -> vector<8x256xf32>
    %c0_4 = arith.constant 0 : index
    %c0_5 = arith.constant 0 : index
    %c0_6 = arith.constant 0 : index
    %4 = vector.load %arg4[%c0_4, %c0_5, %c0_6] : memref<1x1x256xf32, #tpu.memory_space<vmem>>, vector<1x1x256xf32>
    %5 = vector.shape_cast %4 : vector<1x1x256xf32> to vector<1x256xf32>
    %6 = vector.broadcast %5 : vector<1x256xf32> to vector<8x256xf32>
    %7 = arith.addf %3, %6 : vector<8x256xf32>
    %cst_7 = arith.constant 0.00999999977 : f32
    %8 = vector.broadcast %cst_7 : f32 to vector<8x256xf32>
    %9 = arith.mulf %8, %7 : vector<8x256xf32>
    %10 = arith.maximumf %7, %9 : vector<8x256xf32>
    %11 = vector.extract_strided_slice %10 {offsets = [0, 0], sizes = [8, 64], strides = [1, 1]} : vector<8x256xf32> to vector<8x64xf32>
    %c0_8 = arith.constant 0 : index
    %c0_9 = arith.constant 0 : index
    %c0_10 = arith.constant 0 : index
    %12 = vector.load %arg5[%c0_8, %c0_9, %c0_10] : memref<4x64x8xf32, #tpu.memory_space<vmem>>, vector<1x64x8xf32>
    %13 = vector.shape_cast %12 : vector<1x64x8xf32> to vector<64x8xf32>
    %cst_11 = arith.constant dense<0.000000e+00> : vector<8x8xf32>
    %14 = tpu.matmul %11, %13, %cst_11 {dimension_numbers = #tpu.dot_dimension_numbers<[1], [0], [0], [1], [0, 0, 1, 1], [], []>} : vector<8x64xf32>, vector<64x8xf32>, vector<8x8xf32> -> vector<8x8xf32>
    %c0_12 = arith.constant 0 : index
    %c0_13 = arith.constant 0 : index
    %c0_14 = arith.constant 0 : index
    %15 = vector.load %arg6[%c0_12, %c0_13, %c0_14] : memref<4x1x8xf32, #tpu.memory_space<vmem>>, vector<1x1x8xf32>
    %16 = vector.shape_cast %15 : vector<1x1x8xf32> to vector<1x8xf32>
    %17 = vector.broadcast %16 : vector<1x8xf32> to vector<8x8xf32>
    %18 = arith.addf %14, %17 : vector<8x8xf32>
    %c0_15 = arith.constant 0 : index
    %c0_16 = arith.constant 0 : index
    %c0_17 = arith.constant 0 : index
    %19 = vector.load %arg7[%c0_15, %c0_16, %c0_17] : memref<4x8x8xf32, #tpu.memory_space<vmem>>, vector<1x8x8xf32>
    %20 = vector.shape_cast %19 : vector<1x8x8xf32> to vector<8x8xf32>
    %21 = vector.shape_cast %18 : vector<8x8xf32> to vector<1x8x8xf32>
    tpu.vector_store %arg7[%c0_15, %c0_16, %c0_17], %21 {strides = array<i32>} : memref<4x8x8xf32, #tpu.memory_space<vmem>>, vector<1x8x8xf32>,
    %22 = vector.extract_strided_slice %10 {offsets = [0, 64], sizes = [8, 64], strides = [1, 1]} : vector<8x256xf32> to vector<8x64xf32>
    %c1 = arith.constant 1 : index
    %c0_18 = arith.constant 0 : index
    %c0_19 = arith.constant 0 : index
    %23 = vector.load %arg5[%c1, %c0_18, %c0_19] : memref<4x64x8xf32, #tpu.memory_space<vmem>>, vector<1x64x8xf32>
    %24 = vector.shape_cast %23 : vector<1x64x8xf32> to vector<64x8xf32>
    %cst_20 = arith.constant dense<0.000000e+00> : vector<8x8xf32>
    %25 = tpu.matmul %22, %24, %cst_20 {dimension_numbers = #tpu.dot_dimension_numbers<[1], [0], [0], [1], [0, 0, 1, 1], [], []>} : vector<8x64xf32>, vector<64x8xf32>, vector<8x8xf32> -> vector<8x8xf32>
    %c1_21 = arith.constant 1 : index
    %c0_22 = arith.constant 0 : index
    %c0_23 = arith.constant 0 : index
    %26 = vector.load %arg6[%c1_21, %c0_22, %c0_23] : memref<4x1x8xf32, #tpu.memory_space<vmem>>, vector<1x1x8xf32>
    %27 = vector.shape_cast %26 : vector<1x1x8xf32> to vector<1x8xf32>
    %28 = vector.broadcast %27 : vector<1x8xf32> to vector<8x8xf32>
    %29 = arith.addf %25, %28 : vector<8x8xf32>
    %c1_24 = arith.constant 1 : index
    %c0_25 = arith.constant 0 : index
    %c0_26 = arith.constant 0 : index
    %30 = vector.load %arg7[%c1_24, %c0_25, %c0_26] : memref<4x8x8xf32, #tpu.memory_space<vmem>>, vector<1x8x8xf32>
    %31 = vector.shape_cast %30 : vector<1x8x8xf32> to vector<8x8xf32>
    %32 = vector.shape_cast %29 : vector<8x8xf32> to vector<1x8x8xf32>
    tpu.vector_store %arg7[%c1_24, %c0_25, %c0_26], %32 {strides = array<i32>} : memref<4x8x8xf32, #tpu.memory_space<vmem>>, vector<1x8x8xf32>,
    %33 = vector.extract_strided_slice %10 {offsets = [0, 128], sizes = [8, 64], strides = [1, 1]} : vector<8x256xf32> to vector<8x64xf32>
    %c2 = arith.constant 2 : index
    %c0_27 = arith.constant 0 : index
    %c0_28 = arith.constant 0 : index
    %34 = vector.load %arg5[%c2, %c0_27, %c0_28] : memref<4x64x8xf32, #tpu.memory_space<vmem>>, vector<1x64x8xf32>
    %35 = vector.shape_cast %34 : vector<1x64x8xf32> to vector<64x8xf32>
    %cst_29 = arith.constant dense<0.000000e+00> : vector<8x8xf32>
    %36 = tpu.matmul %33, %35, %cst_29 {dimension_numbers = #tpu.dot_dimension_numbers<[1], [0], [0], [1], [0, 0, 1, 1], [], []>} : vector<8x64xf32>, vector<64x8xf32>, vector<8x8xf32> -> vector<8x8xf32>
    %c2_30 = arith.constant 2 : index
    %c0_31 = arith.constant 0 : index
    %c0_32 = arith.constant 0 : index
    %37 = vector.load %arg6[%c2_30, %c0_31, %c0_32] : memref<4x1x8xf32, #tpu.memory_space<vmem>>, vector<1x1x8xf32>
    %38 = vector.shape_cast %37 : vector<1x1x8xf32> to vector<1x8xf32>
    %39 = vector.broadcast %38 : vector<1x8xf32> to vector<8x8xf32>
    %40 = arith.addf %36, %39 : vector<8x8xf32>
    %c2_33 = arith.constant 2 : index
    %c0_34 = arith.constant 0 : index
    %c0_35 = arith.constant 0 : index
    %41 = vector.load %arg7[%c2_33, %c0_34, %c0_35] : memref<4x8x8xf32, #tpu.memory_space<vmem>>, vector<1x8x8xf32>
    %42 = vector.shape_cast %41 : vector<1x8x8xf32> to vector<8x8xf32>
    %43 = vector.shape_cast %40 : vector<8x8xf32> to vector<1x8x8xf32>
    tpu.vector_store %arg7[%c2_33, %c0_34, %c0_35], %43 {strides = array<i32>} : memref<4x8x8xf32, #tpu.memory_space<vmem>>, vector<1x8x8xf32>,
    %44 = vector.extract_strided_slice %10 {offsets = [0, 192], sizes = [8, 64], strides = [1, 1]} : vector<8x256xf32> to vector<8x64xf32>
    %c3 = arith.constant 3 : index
    %c0_36 = arith.constant 0 : index
    %c0_37 = arith.constant 0 : index
    %45 = vector.load %arg5[%c3, %c0_36, %c0_37] : memref<4x64x8xf32, #tpu.memory_space<vmem>>, vector<1x64x8xf32>
    %46 = vector.shape_cast %45 : vector<1x64x8xf32> to vector<64x8xf32>
    %cst_38 = arith.constant dense<0.000000e+00> : vector<8x8xf32>
    %47 = tpu.matmul %44, %46, %cst_38 {dimension_numbers = #tpu.dot_dimension_numbers<[1], [0], [0], [1], [0, 0, 1, 1], [], []>} : vector<8x64xf32>, vector<64x8xf32>, vector<8x8xf32> -> vector<8x8xf32>
    %c3_39 = arith.constant 3 : index
    %c0_40 = arith.constant 0 : index
    %c0_41 = arith.constant 0 : index
    %48 = vector.load %arg6[%c3_39, %c0_40, %c0_41] : memref<4x1x8xf32, #tpu.memory_space<vmem>>, vector<1x1x8xf32>
    %49 = vector.shape_cast %48 : vector<1x1x8xf32> to vector<1x8xf32>
    %50 = vector.broadcast %49 : vector<1x8xf32> to vector<8x8xf32>
    %51 = arith.addf %47, %50 : vector<8x8xf32>
    %c3_42 = arith.constant 3 : index
    %c0_43 = arith.constant 0 : index
    %c0_44 = arith.constant 0 : index
    %52 = vector.load %arg7[%c3_42, %c0_43, %c0_44] : memref<4x8x8xf32, #tpu.memory_space<vmem>>, vector<1x8x8xf32>
    %53 = vector.shape_cast %52 : vector<1x8x8xf32> to vector<8x8xf32>
    %54 = vector.shape_cast %51 : vector<8x8xf32> to vector<1x8x8xf32>
    tpu.vector_store %arg7[%c3_42, %c0_43, %c0_44], %54 {strides = array<i32>} : memref<4x8x8xf32, #tpu.memory_space<vmem>>, vector<1x8x8xf32>,
    return
  }
  func.func @transform_0(%arg0: i32, %arg1: i32) -> (i32, i32) {
    %c0_i32 = arith.constant 0 : i32
    %c0_i32_0 = arith.constant 0 : i32
    return %arg1, %c0_i32 : i32, i32
  }
  func.func @transform_1(%arg0: i32, %arg1: i32) -> (i32, i32, i32) {
    %c0_i32 = arith.constant 0 : i32
    %c0_i32_0 = arith.constant 0 : i32
    %c0_i32_1 = arith.constant 0 : i32
    return %arg0, %c0_i32, %c0_i32_0 : i32, i32, i32
  }
  func.func @transform_2(%arg0: i32, %arg1: i32) -> (i32, i32, i32) {
    %c0_i32 = arith.constant 0 : i32
    %c0_i32_0 = arith.constant 0 : i32
    %c0_i32_1 = arith.constant 0 : i32
    return %arg0, %c0_i32, %c0_i32_0 : i32, i32, i32
  }
  func.func @transform_3(%arg0: i32, %arg1: i32) -> (i32, i32, i32) {
    %c0_i32 = arith.constant 0 : i32
    %c0_i32_0 = arith.constant 0 : i32
    %c0_i32_1 = arith.constant 0 : i32
    return %arg0, %c0_i32, %c0_i32_0 : i32, i32, i32
  }
  func.func @transform_4(%arg0: i32, %arg1: i32) -> (i32, i32, i32) {
    %c0_i32 = arith.constant 0 : i32
    %c0_i32_0 = arith.constant 0 : i32
    %c0_i32_1 = arith.constant 0 : i32
    return %arg0, %c0_i32, %c0_i32_0 : i32, i32, i32
  }
  func.func @transform_5(%arg0: i32, %arg1: i32) -> (i32, i32, i32) {
    %c0_i32 = arith.constant 0 : i32
    %c0_i32_0 = arith.constant 0 : i32
    return %arg0, %arg1, %c0_i32 : i32, i32, i32
  }
}

</mosaic_0001>

<llo_original>
// kernel: tpu_custom_call.1
$region0: #{tpu_custom_call.1}
  #allocation0 [shape = 'u32[]', space=smem, size = 0x4, offset = 0x4, fixed_abs, tag = 'smem constant byte address 0x4 - core index']
  #allocation1 [shape = 'u32[144,128]{1,0:T(1,128)}', space=vmem, size = 0x12000, scoped, tag = 'internal scratch']
  %s0 = inlined_call_operand.vmem [shape: f32[8,32], index: 0, kind: input, shape index: {}]
  %s1 = inlined_call_operand.vmem [shape: f32[2,32,256], index: 1, kind: input, shape index: {}]
  %s2 = inlined_call_operand.vmem [shape: f32[2,1,256], index: 2, kind: input, shape index: {}]
  %s3 = inlined_call_operand.vmem [shape: f32[8,64,8], index: 3, kind: input, shape index: {}]
  %s4 = inlined_call_operand.vmem [shape: f32[8,1,8], index: 4, kind: input, shape index: {}]
  %s5 = inlined_call_operand.hbm [shape: f32[8,8,8], index: 5, kind: output, shape index: {}]
  %s6 = sld [smem:[#allocation0]]
  $region53: #{tpu_custom_call.1} parent=0
    _
  %s8 = ssub.s32 1, %s6
  %s9 = scalar_select 0, %s8, %s6
  $region1: #{tpu_custom_call.1} parent=0
    #allocation2 [shape = 'u8[32768]{0}', space=vmem, size = 0x8000, scoped, tag = 'output window, operand 0']
    #allocation3 [shape = 's32[2]{0}', space=sflag, size = 0x8, scoped, tag = 'scoped memory for tpu_custom_call.1']
    %10 = vsyncpa [#allocation3], 0
    %s11 = scalar_lea.sflag [#allocation3], 1
    %12 = vsyncpa %s11, 0
    loop: start=0, step=1, limit=4
    $region2: #{tpu_custom_call.1} parent=1 // loop_pre_header
      _
    $region3: #{tpu_custom_call.1} parent=1 // loop_header
      %s14 = sphi 0, %s18
      %p15 = scmp.ge.s32.totalorder %s14, 4
      %s21 = sphi 0, %s33
      %s22 = sphi 0, %s29
      %s23 = sphi 0, %s21
      %s24 = sphi 0, %s22
      %s25 = sphi 0, %s23
      %s26 = sphi 0, %s24
      %s36 = sphi 0, %s38
      %s39 = sphi 0, %s36
      %s40 = sphi 0, %s39
      %s56 = sphi 0, %s40
      %s62 = sphi 0, %s64
      %s65 = sphi 0, %s62
      %s66 = sphi 0, %s65
      %s82 = sphi 0, %s66
      %s88 = sphi 0, %s90
      %s91 = sphi 0, %s88
      %s92 = sphi 0, %s91
      %s108 = sphi 0, %s92
      %s114 = sphi 0, %s116
      %s117 = sphi 0, %s114
      %s118 = sphi 0, %s117
      %s134 = sphi 0, %s118
      %s140 = sphi 0, %s142
      %s143 = sphi 0, %s140
      %s144 = sphi 0, %s143
      %s160 = sphi 0, %s144
      %s168 = sphi 0, %s170
      %s171 = sphi 0, %s168
      %s172 = sphi 0, %s171
      %s188 = sphi 0, %s172
    $region4: #{tpu_custom_call.1} parent=1 // loop_header_branch
      %17 = sbr.rel (%p15) target = $region8
    $region5: #{tpu_custom_call.1} parent=1 // loop_body
      %s19 = ssub.s32 %s14, 1
      %s20 = ssub.s32 %s14, 2
      %s27 = sadd.s32 1, %s22
      %p28 = scmp.ge.s32.totalorder %s27, 1
      %s29 = scalar_select %p28, 0, %s27
      %s30 = sadd.s32 1, %s21
      %s31 = scalar_select %p28, %s30, %s21
      %p32 = scmp.ge.s32.totalorder %s31, 2
      %s33 = scalar_select %p32, 0, %s31
      %s34 = ssub.s32 %s22, %s29
      %p35 = scmp.eq.s32.totalorder %s34, 0
      %s37 = sadd.s32 %s36, 1
      %s38 = scalar_select %p35, %s36, %s37
      %p41 = pneg %p35
      %p42 = scmp.eq.s32.totalorder %s14, 1
      %p43 = por %p41, %p42
      %p44 = scmp.ne.s32.totalorder %s36, %s39
      %p45 = scmp.eq.s32.totalorder %s14, 0
      %p46 = por %p44, %p45
      %p47 = scmp.ne.s32.totalorder %s36, %s39
      %p48 = scmp.eq.s32.totalorder %s19, 1
      %p49 = por %p47, %p48
      %p50 = scmp.ne.s32.totalorder %s39, %s40
      %p51 = scmp.eq.s32.totalorder %s19, 0
      %p52 = por %p50, %p51
      %p53 = scmp.ne.s32.totalorder %s39, %s40
      %p54 = scmp.eq.s32.totalorder %s20, 1
      %p55 = por %p53, %p54
      %p57 = scmp.ne.s32.totalorder %s40, %s56
      %p58 = scmp.eq.s32.totalorder %s20, 0
      %p59 = por %p57, %p58
      %s60 = ssub.s32 %s21, %s33
      %p61 = scmp.eq.s32.totalorder %s60, 0
      %s63 = sadd.s32 %s62, 1
      %s64 = scalar_select %p61, %s62, %s63
      %p67 = pneg %p61
      %p68 = scmp.eq.s32.totalorder %s14, 1
      %p69 = por %p67, %p68
      %p70 = scmp.ne.s32.totalorder %s62, %s65
      %p71 = scmp.eq.s32.totalorder %s14, 0
      %p72 = por %p70, %p71
      %p73 = scmp.ne.s32.totalorder %s62, %s65
      %p74 = scmp.eq.s32.totalorder %s19, 1
      %p75 = por %p73, %p74
      %p76 = scmp.ne.s32.totalorder %s65, %s66
      %p77 = scmp.eq.s32.totalorder %s19, 0
      %p78 = por %p76, %p77
      %p79 = scmp.ne.s32.totalorder %s65, %s66
      %p80 = scmp.eq.s32.totalorder %s20, 1
      %p81 = por %p79, %p80
      %p83 = scmp.ne.s32.totalorder %s66, %s82
      %p84 = scmp.eq.s32.totalorder %s20, 0
      %p85 = por %p83, %p84
      %s86 = ssub.s32 %s21, %s33
      %p87 = scmp.eq.s32.totalorder %s86, 0
      %s89 = sadd.s32 %s88, 1
      %s90 = scalar_select %p87, %s88, %s89
      %p93 = pneg %p87
      %p94 = scmp.eq.s32.totalorder %s14, 1
      %p95 = por %p93, %p94
      %p96 = scmp.ne.s32.totalorder %s88, %s91
      %p97 = scmp.eq.s32.totalorder %s14, 0
      %p98 = por %p96, %p97
      %p99 = scmp.ne.s32.totalorder %s88, %s91
      %p100 = scmp.eq.s32.totalorder %s19, 1
      %p101 = por %p99, %p100
      %p102 = scmp.ne.s32.totalorder %s91, %s92
      %p103 = scmp.eq.s32.totalorder %s19, 0
      %p104 = por %p102, %p103
      %p105 = scmp.ne.s32.totalorder %s91, %s92
      %p106 = scmp.eq.s32.totalorder %s20, 1
      %p107 = por %p105, %p106
      %p109 = scmp.ne.s32.totalorder %s92, %s108
      %p110 = scmp.eq.s32.totalorder %s20, 0
      %p111 = por %p109, %p110
      %s112 = ssub.s32 %s21, %s33
      %p113 = scmp.eq.s32.totalorder %s112, 0
      %s115 = sadd.s32 %s114, 1
      %s116 = scalar_select %p113, %s114, %s115
      %p119 = pneg %p113
      %p120 = scmp.eq.s32.totalorder %s14, 1
      %p121 = por %p119, %p120
      %p122 = scmp.ne.s32.totalorder %s114, %s117
      %p123 = scmp.eq.s32.totalorder %s14, 0
      %p124 = por %p122, %p123
      %p125 = scmp.ne.s32.totalorder %s114, %s117
      %p126 = scmp.eq.s32.totalorder %s19, 1
      %p127 = por %p125, %p126
      %p128 = scmp.ne.s32.totalorder %s117, %s118
      %p129 = scmp.eq.s32.totalorder %s19, 0
      %p130 = por %p128, %p129
      %p131 = scmp.ne.s32.totalorder %s117, %s118
      %p132 = scmp.eq.s32.totalorder %s20, 1
      %p133 = por %p131, %p132
      %p135 = scmp.ne.s32.totalorder %s118, %s134
      %p136 = scmp.eq.s32.totalorder %s20, 0
      %p137 = por %p135, %p136
      %s138 = ssub.s32 %s21, %s33
      %p139 = scmp.eq.s32.totalorder %s138, 0
      %s141 = sadd.s32 %s140, 1
      %s142 = scalar_select %p139, %s140, %s141
      %p145 = pneg %p139
      %p146 = scmp.eq.s32.totalorder %s14, 1
      %p147 = por %p145, %p146
      %p148 = scmp.ne.s32.totalorder %s140, %s143
      %p149 = scmp.eq.s32.totalorder %s14, 0
      %p150 = por %p148, %p149
      %p151 = scmp.ne.s32.totalorder %s140, %s143
      %p152 = scmp.eq.s32.totalorder %s19, 1
      %p153 = por %p151, %p152
      %p154 = scmp.ne.s32.totalorder %s143, %s144
      %p155 = scmp.eq.s32.totalorder %s19, 0
      %p156 = por %p154, %p155
      %p157 = scmp.ne.s32.totalorder %s143, %s144
      %p158 = scmp.eq.s32.totalorder %s20, 1
      %p159 = por %p157, %p158
      %p161 = scmp.ne.s32.totalorder %s144, %s160
      %p162 = scmp.eq.s32.totalorder %s20, 0
      %p163 = por %p161, %p162
      %s164 = ssub.s32 %s21, %s33
      %s165 = ssub.s32 %s22, %s29
      %s166 = sor.u32 %s164, %s165
      %p167 = scmp.eq.s32.totalorder %s166, 0
      %s169 = sadd.s32 %s168, 1
      %s170 = scalar_select %p167, %s168, %s169
      %p173 = pneg %p167
      %p174 = scmp.eq.s32.totalorder %s14, 1
      %p175 = por %p173, %p174
      %p176 = scmp.ne.s32.totalorder %s168, %s171
      %p177 = scmp.eq.s32.totalorder %s14, 0
      %p178 = por %p176, %p177
      %p179 = scmp.ne.s32.totalorder %s168, %s171
      %p180 = scmp.eq.s32.totalorder %s19, 1
      %p181 = por %p179, %p180
      %p182 = scmp.ne.s32.totalorder %s171, %s172
      %p183 = scmp.eq.s32.totalorder %s19, 0
      %p184 = por %p182, %p183
      %p185 = scmp.ne.s32.totalorder %s171, %s172
      %p186 = scmp.eq.s32.totalorder %s20, 1
      %p187 = por %p185, %p186
      %p189 = scmp.ne.s32.totalorder %s172, %s188
      %p190 = scmp.eq.s32.totalorder %s20, 0
      %p191 = por %p189, %p190
      %p192 = scmp.le.s32.totalorder 1, %s14
      %p193 = scmp.lt.s32.totalorder %s14, 3
      %p194 = pnand %p192, %p193
      %p195 = pneg %p194
      // Predicated region
      $region9: #{tpu_custom_call.1} parent=5 // pred_check
        _
      $region10: #{tpu_custom_call.1} parent=5 // pred_check_branch
        %197 = sbr.rel (%p194) target = $region12
      $region11: #{tpu_custom_call.1} parent=5 // pred_region
        %s198 = ssub.s32 %s14, 1
        // Predicated region
        $region13: #{tpu_custom_call.1} parent=11 // pred_check
          %p199 = pneg %p52
        $region14: #{tpu_custom_call.1} parent=11 // pred_check_branch
          %201 = sbr.rel (%p199) target = $region16
        $region15: #{tpu_custom_call.1} parent=11 // pred_region
          %p202 = scmp.lt.s32.totalorder %s24, 0
          %s203 = scalar_select %p202, %s24, 0
          %s204 = smul.addr %s203, 8
          %s205 = scalar_lea.vmem %s0, %s204
        $region16: #{tpu_custom_call.1} parent=11 // pred_fallthru
          _
      $region12: #{tpu_custom_call.1} parent=5 // pred_fallthru
        _
      %p206 = scmp.lt.s32.totalorder %s14, 2
      // Predicated region
      $region17: #{tpu_custom_call.1} parent=5 // pred_check
        %p207 = pneg %p206
      $region18: #{tpu_custom_call.1} parent=5 // pred_check_branch
        %209 = sbr.rel (%p207) target = $region20
      $region19: #{tpu_custom_call.1} parent=5 // pred_region
        // Predicated region
        $region21: #{tpu_custom_call.1} parent=19 // pred_check
          %p210 = pneg %p72
        $region22: #{tpu_custom_call.1} parent=19 // pred_check_branch
          %212 = sbr.rel (%p210) target = $region24
        $region23: #{tpu_custom_call.1} parent=19 // pred_region
          %p213 = scmp.lt.s32.totalorder %s21, 1
          %s214 = scalar_select %p213, %s21, 1
          %s215 = smul.addr %s214, 8
          %s216 = smul.addr %s215, 8
          %s217 = scalar_lea.vmem %s1, %s216
        $region24: #{tpu_custom_call.1} parent=19 // pred_fallthru
          _
        // Predicated region
        $region25: #{tpu_custom_call.1} parent=19 // pred_check
          %p218 = pneg %p98
        $region26: #{tpu_custom_call.1} parent=19 // pred_check_branch
          %220 = sbr.rel (%p218) target = $region28
        $region27: #{tpu_custom_call.1} parent=19 // pred_region
          %p221 = scmp.lt.s32.totalorder %s21, 1
          %s222 = scalar_select %p221, %s21, 1
          %s223 = smul.addr %s222, 2
          %s224 = scalar_lea.vmem %s2, %s223
        $region28: #{tpu_custom_call.1} parent=19 // pred_fallthru
          _
        // Predicated region
        $region29: #{tpu_custom_call.1} parent=19 // pred_check
          %p225 = pneg %p124
        $region30: #{tpu_custom_call.1} parent=19 // pred_check_branch
          %227 = sbr.rel (%p225) target = $region32
        $region31: #{tpu_custom_call.1} parent=19 // pred_region
          %s228 = smul.u32 4, %s21
          %p229 = scmp.lt.s32.totalorder %s228, 7
          %s230 = scalar_select %p229, %s228, 7
          %s231 = smul.addr %s230, 8
          %s232 = smul.addr %s231, 8
          %s233 = scalar_lea.vmem %s3, %s232
          %s234 = smul.u32 4, %s21
        $region32: #{tpu_custom_call.1} parent=19 // pred_fallthru
          _
        // Predicated region
        $region33: #{tpu_custom_call.1} parent=19 // pred_check
          %p235 = pneg %p150
        $region34: #{tpu_custom_call.1} parent=19 // pred_check_branch
          %237 = sbr.rel (%p235) target = $region36
        $region35: #{tpu_custom_call.1} parent=19 // pred_region
          %s238 = smul.u32 4, %s21
          %p239 = scmp.lt.s32.totalorder %s238, 7
          %s240 = scalar_select %p239, %s238, 7
          %s241 = scalar_lea.vmem %s4, %s240
          %s242 = smul.u32 4, %s21
        $region36: #{tpu_custom_call.1} parent=19 // pred_fallthru
          _
      $region20: #{tpu_custom_call.1} parent=5 // pred_fallthru
        _
      %p243 = scmp.le.s32.totalorder 1, %s14
      %p244 = scmp.lt.s32.totalorder %s14, 3
      %p245 = pnand %p243, %p244
      %p246 = pneg %p245
      // Predicated region
      $region37: #{tpu_custom_call.1} parent=5 // pred_check
        _
      $region38: #{tpu_custom_call.1} parent=5 // pred_check_branch
        %248 = sbr.rel (%p245) target = $region40
      $region39: #{tpu_custom_call.1} parent=5 // pred_region
        %s249 = ssub.s32 %s14, 1
        %p250 = scmp.lt.s32.totalorder %s24, 0
        %s251 = scalar_select %p250, %s24, 0
        %s252 = smul.addr %s251, 8
        %s253 = scalar_lea.vmem %s0, %s252
        %p254 = pneg %p52
        %p255 = pneg %p49
        %p256 = scmp.lt.s32.totalorder %s23, 1
        %s257 = scalar_select %p256, %s23, 1
        %s258 = smul.addr %s257, 8
        %s259 = smul.addr %s258, 8
        %s260 = scalar_lea.vmem %s1, %s259
        %p261 = pneg %p78
        %p262 = pneg %p75
        %p263 = scmp.lt.s32.totalorder %s23, 1
        %s264 = scalar_select %p263, %s23, 1
        %s265 = smul.addr %s264, 2
        %s266 = scalar_lea.vmem %s2, %s265
        %p267 = pneg %p104
        %p268 = pneg %p101
        %s269 = smul.u32 4, %s23
        %p270 = scmp.lt.s32.totalorder %s269, 7
        %s271 = scalar_select %p270, %s269, 7
        %s272 = smul.addr %s271, 8
        %s273 = smul.addr %s272, 8
        %s274 = scalar_lea.vmem %s3, %s273
        %p275 = pneg %p130
        %p276 = pneg %p127
        %s277 = smul.u32 4, %s23
        %p278 = scmp.lt.s32.totalorder %s277, 7
        %s279 = scalar_select %p278, %s277, 7
        %s280 = scalar_lea.vmem %s4, %s279
        %p281 = pneg %p156
        %p282 = pneg %p153
        %p283 = pneg %p184
        %p284 = pneg %p181
        %s285 = sand.u32 %s171, 1
        %s286 = scalar_lea.sflag [#allocation3], %s285
        %s287 = sand.u32 %s171, 1
        %s288 = smul.addr %s287, 32
        %s289 = scalar_lea.vmem [#allocation2], %s288
        %p290 = scmp.lt.s32.totalorder %s24, 0
        %s291 = scalar_select %p290, %s24, 0
        %s292 = smul.addr %s291, 8
        %s293 = scalar_lea.vmem %s0, %s292
        %p294 = scmp.lt.s32.totalorder %s23, 1
        %s295 = scalar_select %p294, %s23, 1
        %s296 = smul.addr %s295, 8
        %s297 = smul.addr %s296, 8
        %s298 = scalar_lea.vmem %s1, %s297
        %p299 = scmp.lt.s32.totalorder %s23, 1
        %s300 = scalar_select %p299, %s23, 1
        %s301 = smul.addr %s300, 2
        %s302 = scalar_lea.vmem %s2, %s301
        %s303 = smul.u32 4, %s23
        %p304 = scmp.lt.s32.totalorder %s303, 7
        %s305 = scalar_select %p304, %s303, 7
        %s306 = smul.addr %s305, 8
        %s307 = smul.addr %s306, 8
        %s308 = scalar_lea.vmem %s3, %s307
        %s309 = smul.u32 4, %s23
        %s310 = smul.u32 4, %s23
        %p311 = scmp.lt.s32.totalorder %s310, 7
        %s312 = scalar_select %p311, %s310, 7
        %s313 = scalar_lea.vmem %s4, %s312
        %s314 = smul.u32 4, %s23
        %s315 = smul.u32 4, %s23
        %v316 = vld [vmem:[%s293] sm:$0xff]
        %v317 = vld [vmem:[%s298] sm:$0xff]
        %v318 = vld [vmem:[%s298 + $0x8] sm:$0xff]
        %v319 = vld [vmem:[%s298 + $0x10] sm:$0xff]
        %v320 = vld [vmem:[%s298 + $0x18] sm:$0xff]
        %v321 = vld [vmem:[%s298 + $0x20] sm:$0xff]
        %v322 = vld [vmem:[%s298 + $0x28] sm:$0xff]
        %v323 = vld [vmem:[%s298 + $0x30] sm:$0xff]
        %v324 = vld [vmem:[%s298 + $0x38] sm:$0xff]
        %v325 = vld [vmem:[%s302] sm:$0x3]
        %v327 = vlaneseq
        %v328 = vshrl.u32 %v327, 7
        %v329 = vsub.s32 0, %v328
        %v330 = vrot.slane %v325, %v329
        %v331 = vlaneseq
        %v332 = vshrl.u32 %v331, 7
        %v333 = vsub.s32 1, %v332
        %v334 = vrot.slane %v325, %v333
        %vm337 = vcmask 261120
        %v339 = vsel %vm337, %v316, 0
        %341 = vmatprep.subr.mxu0 %v318
        %342 = vmatpush1.msra.mxu0 %v317
        %343 = vmatprep.subr.mxu0 %v320
        %344 = vmatpush1.msra.mxu0 %v319
        %345 = vmatprep.subr.mxu0 %v322
        %346 = vmatpush1.msra.mxu0 %v321
        %347 = vmatprep.subr.mxu0 %v324
        %348 = vmatpush1.msra.mxu0 %v323
        %349 = vmatprep.subr.mxu0 0.0
        %350 = vmatpush1.msra.mxu0 0.0
        %351 = vmatprep.subr.mxu0 0.0
        %352 = vmatpush1.msra.mxu0 0.0
        %353 = vmatprep.subr.mxu0 0.0
        %354 = vmatpush1.msra.mxu0 0.0
        %355 = vmatprep.subr.mxu0 0.0
        %356 = vmatpush1.msra.mxu0 0.0
        %357 = vmatprep.subr.mxu0 0.0
        %358 = vmatpush1.msra.mxu0 0.0
        %359 = vmatprep.subr.mxu0 0.0
        %360 = vmatpush1.msra.mxu0 0.0
        %361 = vmatprep.subr.mxu0 0.0
        %362 = vmatpush1.msra.mxu0 0.0
        %363 = vmatprep.subr.mxu0 0.0
        %364 = vmatpush1.msra.mxu0 0.0
        %365 = vmatprep.subr.mxu0 0.0
        %366 = vmatpush1.msra.mxu0 0.0
        %367 = vmatprep.subr.mxu0 0.0
        %368 = vmatpush1.msra.mxu0 0.0
        %369 = vmatprep.subr.mxu0 0.0
        %370 = vmatpush1.msra.mxu0 0.0
        %371 = vmatprep.subr.mxu0 0.0
        %372 = vmatpush1.msra.mxu0 0.0
        %373 = vmatprep.subr.mxu0 0.0
        %374 = vmatpush1.msra.mxu0 0.0
        %375 = vmatprep.subr.mxu0 0.0
        %376 = vmatpush1.msra.mxu0 0.0
        %377 = vmatprep.subr.mxu0 0.0
        %378 = vmatpush1.msra.mxu0 0.0
        %379 = vmatprep.subr.mxu0 0.0
        %380 = vmatpush1.msra.mxu0 0.0
        %381 = vmatprep.subr.mxu0 0.0
        %382 = vmatpush1.msra.mxu0 0.0
        %383 = vmatprep.subr.mxu0 0.0
        %384 = vmatpush1.msra.mxu0 0.0
        %385 = vmatprep.subr.mxu0 0.0
        %386 = vmatpush1.msra.mxu0 0.0
        %387 = vmatprep.subr.mxu0 0.0
        %388 = vmatpush1.msra.mxu0 0.0
        %389 = vmatprep.subr.mxu0 0.0
        %390 = vmatpush1.msra.mxu0 0.0
        %391 = vmatprep.subr.mxu0 0.0
        %392 = vmatpush1.msra.mxu0 0.0
        %393 = vmatprep.subr.mxu0 0.0
        %394 = vmatpush1.msra.mxu0 0.0
        %395 = vmatprep.subr.mxu0 0.0
        %396 = vmatpush1.msra.mxu0 0.0
        %397 = vmatprep.subr.mxu0 0.0
        %398 = vmatpush1.msra.mxu0 0.0
        %399 = vmatprep.subr.mxu0 0.0
        %400 = vmatpush1.msra.mxu0 0.0
        %401 = vmatprep.subr.mxu0 0.0
        %402 = vmatpush1.msra.mxu0 0.0
        %403 = vmatprep.subr.mxu0 0.0
        %404 = vmatpush1.msra.mxu0 0.0
        %405 = vmatprep.mubr.f32.mxu0 0.0
        %406 = vmatmul.mubr.f32.gmra.mrb[0].mxu0 %v339
        %v407 = vpop.f32.mrb[0].mxu0
        %v408 = vadd.f32 %v330, %v407
        %v409 = vpop.f32.mrb[0].mxu0
        %v410 = vadd.f32 %v334, %v409
        %411 = vdwg.mxu0
        %v412 = vmul.f32 %v408, 0.01
        %v413 = vmul.f32 %v410, 0.01
        %v414 = vmax.f32 %v408, %v412
        %v415 = vmax.f32 %v410, %v413
        %v416 = vld [vmem:[%s308] sm:$0xff]
        %v417 = vld [vmem:[%s308 + $0x8] sm:$0xff]
        %v418 = vld [vmem:[%s308 + $0x10] sm:$0xff]
        %v419 = vld [vmem:[%s308 + $0x18] sm:$0xff]
        %v420 = vld [vmem:[%s308 + $0x20] sm:$0xff]
        %v421 = vld [vmem:[%s308 + $0x28] sm:$0xff]
        %v422 = vld [vmem:[%s308 + $0x30] sm:$0xff]
        %v423 = vld [vmem:[%s308 + $0x38] sm:$0xff]
        %v424 = vld [vmem:[%s313] sm:$0x1]
        %v426 = vlaneseq
        %v427 = vshrl.u32 %v426, 7
        %v428 = vsub.s32 0, %v427
        %v429 = vrot.slane %v424, %v428
        %vm431 = vcmask 523264
        %v433 = vsel %vm431, %v414, 0
        %435 = vmatprep.subr.mxu0 0.0
        %436 = vmatpush1.msra.mxu0 %v416
        %437 = vmatprep.subr.mxu0 0.0
        %438 = vmatpush1.msra.mxu0 %v417
        %439 = vmatprep.subr.mxu0 0.0
        %440 = vmatpush1.msra.mxu0 %v418
        %441 = vmatprep.subr.mxu0 0.0
        %442 = vmatpush1.msra.mxu0 %v419
        %443 = vmatprep.subr.mxu0 0.0
        %444 = vmatpush1.msra.mxu0 %v420
        %445 = vmatprep.subr.mxu0 0.0
        %446 = vmatpush1.msra.mxu0 %v421
        %447 = vmatprep.subr.mxu0 0.0
        %448 = vmatpush1.msra.mxu0 %v422
        %449 = vmatprep.subr.mxu0 0.0
        %450 = vmatpush1.msra.mxu0 %v423
        %451 = vmatprep.subr.mxu0 0.0
        %452 = vmatpush1.msra.mxu0 0.0
        %453 = vmatprep.subr.mxu0 0.0
        %454 = vmatpush1.msra.mxu0 0.0
        %455 = vmatprep.subr.mxu0 0.0
        %456 = vmatpush1.msra.mxu0 0.0
        %457 = vmatprep.subr.mxu0 0.0
        %458 = vmatpush1.msra.mxu0 0.0
        %459 = vmatprep.subr.mxu0 0.0
        %460 = vmatpush1.msra.mxu0 0.0
        %461 = vmatprep.subr.mxu0 0.0
        %462 = vmatpush1.msra.mxu0 0.0
        %463 = vmatprep.subr.mxu0 0.0
        %464 = vmatpush1.msra.mxu0 0.0
        %465 = vmatprep.subr.mxu0 0.0
        %466 = vmatpush1.msra.mxu0 0.0
        %467 = vmatprep.subr.mxu0 0.0
        %468 = vmatpush1.msra.mxu0 0.0
        %469 = vmatprep.subr.mxu0 0.0
        %470 = vmatpush1.msra.mxu0 0.0
        %471 = vmatprep.subr.mxu0 0.0
        %472 = vmatpush1.msra.mxu0 0.0
        %473 = vmatprep.subr.mxu0 0.0
        %474 = vmatpush1.msra.mxu0 0.0
        %475 = vmatprep.subr.mxu0 0.0
        %476 = vmatpush1.msra.mxu0 0.0
        %477 = vmatprep.subr.mxu0 0.0
        %478 = vmatpush1.msra.mxu0 0.0
        %479 = vmatprep.subr.mxu0 0.0
        %480 = vmatpush1.msra.mxu0 0.0
        %481 = vmatprep.subr.mxu0 0.0
        %482 = vmatpush1.msra.mxu0 0.0
        %483 = vmatprep.subr.mxu0 0.0
        %484 = vmatpush1.msra.mxu0 0.0
        %485 = vmatprep.subr.mxu0 0.0
        %486 = vmatpush1.msra.mxu0 0.0
        %487 = vmatprep.subr.mxu0 0.0
        %488 = vmatpush1.msra.mxu0 0.0
        %489 = vmatprep.subr.mxu0 0.0
        %490 = vmatpush1.msra.mxu0 0.0
        %491 = vmatprep.subr.mxu0 0.0
        %492 = vmatpush1.msra.mxu0 0.0
        %493 = vmatprep.subr.mxu0 0.0
        %494 = vmatpush1.msra.mxu0 0.0
        %495 = vmatprep.subr.mxu0 0.0
        %496 = vmatpush1.msra.mxu0 0.0
        %497 = vmatprep.subr.mxu0 0.0
        %498 = vmatpush1.msra.mxu0 0.0
        %499 = vmatprep.mubr.f32.mxu0 0.0
        %500 = vmatmul.mubr.f32.gmra.mrb[0].mxu0 %v433
        %v501 = vpop.f32.mrb[0].mxu0
        %v502 = vadd.f32 %v429, %v501
        %v503 = vpop.f32.mrb[0].mxu0
        %504 = vdwg.mxu0
        %vm505 = vcmask 64512
        %506 = vst.msk [vmem:[%s289] sm:$0xff] %vm505, %v502
        %s507 = scalar_lea.vmem %s308, 64
        %v508 = vld [vmem:[%s507] sm:$0xff]
        %v509 = vld [vmem:[%s507 + $0x8] sm:$0xff]
        %v510 = vld [vmem:[%s507 + $0x10] sm:$0xff]
        %v511 = vld [vmem:[%s507 + $0x18] sm:$0xff]
        %v512 = vld [vmem:[%s507 + $0x20] sm:$0xff]
        %v513 = vld [vmem:[%s507 + $0x28] sm:$0xff]
        %v514 = vld [vmem:[%s507 + $0x30] sm:$0xff]
        %v515 = vld [vmem:[%s507 + $0x38] sm:$0xff]
        %s516 = scalar_lea.vmem %s313, 1
        %v517 = vld [vmem:[%s516] sm:$0x1]
        %v519 = vlaneseq
        %v520 = vshrl.u32 %v519, 7
        %v521 = vsub.s32 0, %v520
        %v522 = vrot.slane %v517, %v521
        %524 = vrot.lane.b32.xlu0 %v414, 64
        %v525 = vpop.permute.xlu0 %524
        %v526 = vsel %vm431, %v525, 0
        %528 = vmatprep.subr.mxu0 0.0
        %529 = vmatpush1.msra.mxu0 %v508
        %530 = vmatprep.subr.mxu0 0.0
        %531 = vmatpush1.msra.mxu0 %v509
        %532 = vmatprep.subr.mxu0 0.0
        %533 = vmatpush1.msra.mxu0 %v510
        %534 = vmatprep.subr.mxu0 0.0
        %535 = vmatpush1.msra.mxu0 %v511
        %536 = vmatprep.subr.mxu0 0.0
        %537 = vmatpush1.msra.mxu0 %v512
        %538 = vmatprep.subr.mxu0 0.0
        %539 = vmatpush1.msra.mxu0 %v513
        %540 = vmatprep.subr.mxu0 0.0
        %541 = vmatpush1.msra.mxu0 %v514
        %542 = vmatprep.subr.mxu0 0.0
        %543 = vmatpush1.msra.mxu0 %v515
        %544 = vmatprep.subr.mxu0 0.0
        %545 = vmatpush1.msra.mxu0 0.0
        %546 = vmatprep.subr.mxu0 0.0
        %547 = vmatpush1.msra.mxu0 0.0
        %548 = vmatprep.subr.mxu0 0.0
        %549 = vmatpush1.msra.mxu0 0.0
        %550 = vmatprep.subr.mxu0 0.0
        %551 = vmatpush1.msra.mxu0 0.0
        %552 = vmatprep.subr.mxu0 0.0
        %553 = vmatpush1.msra.mxu0 0.0
        %554 = vmatprep.subr.mxu0 0.0
        %555 = vmatpush1.msra.mxu0 0.0
        %556 = vmatprep.subr.mxu0 0.0
        %557 = vmatpush1.msra.mxu0 0.0
        %558 = vmatprep.subr.mxu0 0.0
        %559 = vmatpush1.msra.mxu0 0.0
        %560 = vmatprep.subr.mxu0 0.0
        %561 = vmatpush1.msra.mxu0 0.0
        %562 = vmatprep.subr.mxu0 0.0
        %563 = vmatpush1.msra.mxu0 0.0
        %564 = vmatprep.subr.mxu0 0.0
        %565 = vmatpush1.msra.mxu0 0.0
        %566 = vmatprep.subr.mxu0 0.0
        %567 = vmatpush1.msra.mxu0 0.0
        %568 = vmatprep.subr.mxu0 0.0
        %569 = vmatpush1.msra.mxu0 0.0
        %570 = vmatprep.subr.mxu0 0.0
        %571 = vmatpush1.msra.mxu0 0.0
        %572 = vmatprep.subr.mxu0 0.0
        %573 = vmatpush1.msra.mxu0 0.0
        %574 = vmatprep.subr.mxu0 0.0
        %575 = vmatpush1.msra.mxu0 0.0
        %576 = vmatprep.subr.mxu0 0.0
        %577 = vmatpush1.msra.mxu0 0.0
        %578 = vmatprep.subr.mxu0 0.0
        %579 = vmatpush1.msra.mxu0 0.0
        %580 = vmatprep.subr.mxu0 0.0
        %581 = vmatpush1.msra.mxu0 0.0
        %582 = vmatprep.subr.mxu0 0.0
        %583 = vmatpush1.msra.mxu0 0.0
        %584 = vmatprep.subr.mxu0 0.0
        %585 = vmatpush1.msra.mxu0 0.0
        %586 = vmatprep.subr.mxu0 0.0
        %587 = vmatpush1.msra.mxu0 0.0
        %588 = vmatprep.subr.mxu0 0.0
        %589 = vmatpush1.msra.mxu0 0.0
        %590 = vmatprep.subr.mxu0 0.0
        %591 = vmatpush1.msra.mxu0 0.0
        %592 = vmatprep.mubr.f32.mxu0 0.0
        %593 = vmatmul.mubr.f32.gmra.mrb[0].mxu0 %v526
        %v594 = vpop.f32.mrb[0].mxu0
        %v595 = vadd.f32 %v522, %v594
        %v596 = vpop.f32.mrb[0].mxu0
        %597 = vdwg.mxu0
        %s598 = scalar_lea.vmem %s289, 8 [#allocation2]
        %599 = vst.msk [vmem:[%s598] sm:$0xff] %vm505, %v595
        %s600 = scalar_lea.vmem %s308, 128
        %v601 = vld [vmem:[%s600] sm:$0xff]
        %v602 = vld [vmem:[%s600 + $0x8] sm:$0xff]
        %v603 = vld [vmem:[%s600 + $0x10] sm:$0xff]
        %v604 = vld [vmem:[%s600 + $0x18] sm:$0xff]
        %v605 = vld [vmem:[%s600 + $0x20] sm:$0xff]
        %v606 = vld [vmem:[%s600 + $0x28] sm:$0xff]
        %v607 = vld [vmem:[%s600 + $0x30] sm:$0xff]
        %v608 = vld [vmem:[%s600 + $0x38] sm:$0xff]
        %s609 = scalar_lea.vmem %s313, 2
        %v610 = vld [vmem:[%s609] sm:$0x1]
        %v612 = vlaneseq
        %v613 = vshrl.u32 %v612, 7
        %v614 = vsub.s32 0, %v613
        %v615 = vrot.slane %v610, %v614
        %v618 = vsel %vm431, %v415, 0
        %620 = vmatprep.subr.mxu0 0.0
        %621 = vmatpush1.msra.mxu0 %v601
        %622 = vmatprep.subr.mxu0 0.0
        %623 = vmatpush1.msra.mxu0 %v602
        %624 = vmatprep.subr.mxu0 0.0
        %625 = vmatpush1.msra.mxu0 %v603
        %626 = vmatprep.subr.mxu0 0.0
        %627 = vmatpush1.msra.mxu0 %v604
        %628 = vmatprep.subr.mxu0 0.0
        %629 = vmatpush1.msra.mxu0 %v605
        %630 = vmatprep.subr.mxu0 0.0
        %631 = vmatpush1.msra.mxu0 %v606
        %632 = vmatprep.subr.mxu0 0.0
        %633 = vmatpush1.msra.mxu0 %v607
        %634 = vmatprep.subr.mxu0 0.0
        %635 = vmatpush1.msra.mxu0 %v608
        %636 = vmatprep.subr.mxu0 0.0
        %637 = vmatpush1.msra.mxu0 0.0
        %638 = vmatprep.subr.mxu0 0.0
        %639 = vmatpush1.msra.mxu0 0.0
        %640 = vmatprep.subr.mxu0 0.0
        %641 = vmatpush1.msra.mxu0 0.0
        %642 = vmatprep.subr.mxu0 0.0
        %643 = vmatpush1.msra.mxu0 0.0
        %644 = vmatprep.subr.mxu0 0.0
        %645 = vmatpush1.msra.mxu0 0.0
        %646 = vmatprep.subr.mxu0 0.0
        %647 = vmatpush1.msra.mxu0 0.0
        %648 = vmatprep.subr.mxu0 0.0
        %649 = vmatpush1.msra.mxu0 0.0
        %650 = vmatprep.subr.mxu0 0.0
        %651 = vmatpush1.msra.mxu0 0.0
        %652 = vmatprep.subr.mxu0 0.0
        %653 = vmatpush1.msra.mxu0 0.0
        %654 = vmatprep.subr.mxu0 0.0
        %655 = vmatpush1.msra.mxu0 0.0
        %656 = vmatprep.subr.mxu0 0.0
        %657 = vmatpush1.msra.mxu0 0.0
        %658 = vmatprep.subr.mxu0 0.0
        %659 = vmatpush1.msra.mxu0 0.0
        %660 = vmatprep.subr.mxu0 0.0
        %661 = vmatpush1.msra.mxu0 0.0
        %662 = vmatprep.subr.mxu0 0.0
        %663 = vmatpush1.msra.mxu0 0.0
        %664 = vmatprep.subr.mxu0 0.0
        %665 = vmatpush1.msra.mxu0 0.0
        %666 = vmatprep.subr.mxu0 0.0
        %667 = vmatpush1.msra.mxu0 0.0
        %668 = vmatprep.subr.mxu0 0.0
        %669 = vmatpush1.msra.mxu0 0.0
        %670 = vmatprep.subr.mxu0 0.0
        %671 = vmatpush1.msra.mxu0 0.0
        %672 = vmatprep.subr.mxu0 0.0
        %673 = vmatpush1.msra.mxu0 0.0
        %674 = vmatprep.subr.mxu0 0.0
        %675 = vmatpush1.msra.mxu0 0.0
        %676 = vmatprep.subr.mxu0 0.0
        %677 = vmatpush1.msra.mxu0 0.0
        %678 = vmatprep.subr.mxu0 0.0
        %679 = vmatpush1.msra.mxu0 0.0
        %680 = vmatprep.subr.mxu0 0.0
        %681 = vmatpush1.msra.mxu0 0.0
        %682 = vmatprep.subr.mxu0 0.0
        %683 = vmatpush1.msra.mxu0 0.0
        %684 = vmatprep.mubr.f32.mxu0 0.0
        %685 = vmatmul.mubr.f32.gmra.mrb[0].mxu0 %v618
        %v686 = vpop.f32.mrb[0].mxu0
        %v687 = vadd.f32 %v615, %v686
        %v688 = vpop.f32.mrb[0].mxu0
        %689 = vdwg.mxu0
        %s690 = scalar_lea.vmem %s289, 16 [#allocation2]
        %691 = vst.msk [vmem:[%s690] sm:$0xff] %vm505, %v687
        %s692 = scalar_lea.vmem %s308, 192
        %v693 = vld [vmem:[%s692] sm:$0xff]
        %v694 = vld [vmem:[%s692 + $0x8] sm:$0xff]
        %v695 = vld [vmem:[%s692 + $0x10] sm:$0xff]
        %v696 = vld [vmem:[%s692 + $0x18] sm:$0xff]
        %v697 = vld [vmem:[%s692 + $0x20] sm:$0xff]
        %v698 = vld [vmem:[%s692 + $0x28] sm:$0xff]
        %v699 = vld [vmem:[%s692 + $0x30] sm:$0xff]
        %v700 = vld [vmem:[%s692 + $0x38] sm:$0xff]
        %s701 = scalar_lea.vmem %s313, 3
        %v702 = vld [vmem:[%s701] sm:$0x1]
        %v704 = vlaneseq
        %v705 = vshrl.u32 %v704, 7
        %v706 = vsub.s32 0, %v705
        %v707 = vrot.slane %v702, %v706
        %709 = vrot.lane.b32.xlu0 %v415, 64
        %v710 = vpop.permute.xlu0 %709
        %v711 = vsel %vm431, %v710, 0
        %713 = vmatprep.subr.mxu0 0.0
        %714 = vmatpush1.msra.mxu0 %v693
        %715 = vmatprep.subr.mxu0 0.0
        %716 = vmatpush1.msra.mxu0 %v694
        %717 = vmatprep.subr.mxu0 0.0
        %718 = vmatpush1.msra.mxu0 %v695
        %719 = vmatprep.subr.mxu0 0.0
        %720 = vmatpush1.msra.mxu0 %v696
        %721 = vmatprep.subr.mxu0 0.0
        %722 = vmatpush1.msra.mxu0 %v697
        %723 = vmatprep.subr.mxu0 0.0
        %724 = vmatpush1.msra.mxu0 %v698
        %725 = vmatprep.subr.mxu0 0.0
        %726 = vmatpush1.msra.mxu0 %v699
        %727 = vmatprep.subr.mxu0 0.0
        %728 = vmatpush1.msra.mxu0 %v700
        %729 = vmatprep.subr.mxu0 0.0
        %730 = vmatpush1.msra.mxu0 0.0
        %731 = vmatprep.subr.mxu0 0.0
        %732 = vmatpush1.msra.mxu0 0.0
        %733 = vmatprep.subr.mxu0 0.0
        %734 = vmatpush1.msra.mxu0 0.0
        %735 = vmatprep.subr.mxu0 0.0
        %736 = vmatpush1.msra.mxu0 0.0
        %737 = vmatprep.subr.mxu0 0.0
        %738 = vmatpush1.msra.mxu0 0.0
        %739 = vmatprep.subr.mxu0 0.0
        %740 = vmatpush1.msra.mxu0 0.0
        %741 = vmatprep.subr.mxu0 0.0
        %742 = vmatpush1.msra.mxu0 0.0
        %743 = vmatprep.subr.mxu0 0.0
        %744 = vmatpush1.msra.mxu0 0.0
        %745 = vmatprep.subr.mxu0 0.0
        %746 = vmatpush1.msra.mxu0 0.0
        %747 = vmatprep.subr.mxu0 0.0
        %748 = vmatpush1.msra.mxu0 0.0
        %749 = vmatprep.subr.mxu0 0.0
        %750 = vmatpush1.msra.mxu0 0.0
        %751 = vmatprep.subr.mxu0 0.0
        %752 = vmatpush1.msra.mxu0 0.0
        %753 = vmatprep.subr.mxu0 0.0
        %754 = vmatpush1.msra.mxu0 0.0
        %755 = vmatprep.subr.mxu0 0.0
        %756 = vmatpush1.msra.mxu0 0.0
        %757 = vmatprep.subr.mxu0 0.0
        %758 = vmatpush1.msra.mxu0 0.0
        %759 = vmatprep.subr.mxu0 0.0
        %760 = vmatpush1.msra.mxu0 0.0
        %761 = vmatprep.subr.mxu0 0.0
        %762 = vmatpush1.msra.mxu0 0.0
        %763 = vmatprep.subr.mxu0 0.0
        %764 = vmatpush1.msra.mxu0 0.0
        %765 = vmatprep.subr.mxu0 0.0
        %766 = vmatpush1.msra.mxu0 0.0
        %767 = vmatprep.subr.mxu0 0.0
        %768 = vmatpush1.msra.mxu0 0.0
        %769 = vmatprep.subr.mxu0 0.0
        %770 = vmatpush1.msra.mxu0 0.0
        %771 = vmatprep.subr.mxu0 0.0
        %772 = vmatpush1.msra.mxu0 0.0
        %773 = vmatprep.subr.mxu0 0.0
        %774 = vmatpush1.msra.mxu0 0.0
        %775 = vmatprep.subr.mxu0 0.0
        %776 = vmatpush1.msra.mxu0 0.0
        %777 = vmatprep.mubr.f32.mxu0 0.0
        %778 = vmatmul.mubr.f32.gmra.mrb[0].mxu0 %v711
        %v779 = vpop.f32.mrb[0].mxu0
        %v780 = vadd.f32 %v707, %v779
        %v781 = vpop.f32.mrb[0].mxu0
        %782 = vdwg.mxu0
        %s783 = scalar_lea.vmem %s289, 24 [#allocation2]
        %784 = vst.msk [vmem:[%s783] sm:$0xff] %vm505, %v780
        %s785 = sand.u32 %s171, 1
        %s786 = scalar_lea.sflag [#allocation3], %s785
        %s787 = sand.u32 %s171, 1
        %s788 = smul.addr %s787, 32
        %s789 = scalar_lea.vmem [#allocation2], %s788
        // Predicated region
        $region41: #{tpu_custom_call.1} parent=39 // pred_check
          %p790 = pneg %p181
        $region42: #{tpu_custom_call.1} parent=39 // pred_check_branch
          %792 = sbr.rel (%p790) target = $region44
        $region43: #{tpu_custom_call.1} parent=39 // pred_region
          %s793 = smul.u32 4, %s23
          %s795 = ssub.s32 512, 512
          %796 = vsyncadd %s786, %s795
          %s797 = sadd.s32 %s24, %s793
          %s798 = smul.addr %s797, 128
          %s799 = scalar_lea.hbm %s5, %s798
          %s800 = sshll.u32 %s789, 4
          %s801 = int_to_ptr.vmem [resolvable:$true] %s800
          %806 = dma.vmem_to_hbm [thread:$0]  %s801, 512, %s799, %s786, 128, 128, 8
        $region44: #{tpu_custom_call.1} parent=39 // pred_fallthru
          _
      $region40: #{tpu_custom_call.1} parent=5 // pred_fallthru
        _
      %p807 = scmp.le.s32.totalorder 2, %s14
      // Predicated region
      $region45: #{tpu_custom_call.1} parent=5 // pred_check
        %p808 = pneg %p807
      $region46: #{tpu_custom_call.1} parent=5 // pred_check_branch
        %810 = sbr.rel (%p808) target = $region48
      $region47: #{tpu_custom_call.1} parent=5 // pred_region
        %s811 = ssub.s32 %s14, 2
        // Predicated region
        $region49: #{tpu_custom_call.1} parent=47 // pred_check
          %p812 = pneg %p187
        $region50: #{tpu_custom_call.1} parent=47 // pred_check_branch
          %814 = sbr.rel (%p812) target = $region52
        $region51: #{tpu_custom_call.1} parent=47 // pred_region
          %s815 = sand.u32 %s172, 1
          %s816 = scalar_lea.sflag [#allocation3], %s815
          %s817 = sand.u32 %s172, 1
          %s818 = smul.addr %s817, 32
          %s819 = scalar_lea.vmem [#allocation2], %s818
          %820 = dma.done %s816, 512
        $region52: #{tpu_custom_call.1} parent=47 // pred_fallthru
          _
      $region48: #{tpu_custom_call.1} parent=5 // pred_fallthru
        _
    $region6: #{tpu_custom_call.1} parent=1 // loop_footer
      %s18 = sadd.s32 1, %s14
    $region7: #{tpu_custom_call.1} parent=1 // loop_footer_branch
      %13 = sbr.rel target = $region3
    $region8: #{tpu_custom_call.1} parent=1 // loop_exit
      _
    %821 = vsyncpa [#allocation3], 1
    %s822 = scalar_lea.sflag [#allocation3], 1
    %823 = vsyncpa %s822, 1

</llo_original>
